<compile_context>
chip_gen: v6e
topology: v6e:2x2x1
jax: 0.10.0
libtpu: 0.0.40
codegen_flags: <defaults>
</compile_context>

<pallas_src>
import numpy as np
import jax
import jax.numpy as jnp
from jax.experimental import pallas as pl
from jax.experimental.pallas import tpu as pltpu


def _latent_passthrough_kernel(z_ref, o_ref):
    # forward() returns the stored latent codes unchanged.  Because the
    # output HBM buffer is aliased to the input (input_output_aliases={0:0}),
    # this is a same-buffer writeback of one tiny VMEM block.
    o_ref[...] = z_ref[...]


def gpt2_latent_space_forward(z):
    """Pallas equivalent of GPT2LatentSpace.forward(): returns (z,).

    Args:
      z: int32 array of shape (batch_size, dim_z) holding latent codebook
         indices (PyTorch `long` in the original; int32 here — callers must
         ensure encoder_size < 2**31).

    Returns:
      A 1-tuple (z_out,) identical to z (same shape/dtype), matching the
      PyTorch module's `return (self.z,)`.

    Note: the output aliases the input HBM buffer (the input is donated), so
    callers must not reuse `z` afterwards — this mirrors PyTorch returning
    `self.z` by reference rather than a copy.
    """
    out = pl.pallas_call(
        _latent_passthrough_kernel,
        out_shape=jax.ShapeDtypeStruct(z.shape, z.dtype),
        # Grid-less single-block call: whole array in VMEM, no grid loop,
        # no pipeline prologue/epilogue.
        in_specs=[pl.BlockSpec(memory_space=pltpu.MemorySpace.VMEM)],
        out_specs=pl.BlockSpec(memory_space=pltpu.MemorySpace.VMEM),
        # P8: output buffer == input buffer; avoids a second HBM allocation
        # and drops the extra HBM write stream.
        input_output_aliases={0: 0},
    )(z)
    return (out,)


if __name__ == "__main__":
    # Config implied by the module's __init__ (small synthetic shapes):
    batch_size = 2
    dim_z = 8
    encoder_size = 32

    key = jax.random.PRNGKey(0)
    # Deterministic stand-in for torch.randint(0, encoder_size, (batch, dim_z))
    z = jax.random.randint(
        key, shape=(batch_size, dim_z), minval=0, maxval=encoder_size,
        dtype=jnp.int32,
    )

    # Host-side reference copy taken BEFORE the call: the kernel aliases /
    # donates z's device buffer, so z itself may not be readable afterwards.
    z_host = np.asarray(z)

    (z_out,) = gpt2_latent_space_forward(z)
    z_out = jax.block_until_ready(z_out)

    # Correctness check against the (trivial) reference: forward() == (z,)
    assert z_out.shape == (batch_size, dim_z)
    assert z_out.dtype == jnp.int32
    assert np.array_equal(np.asarray(z_out), z_host)

    print("KERNEL_OK")
</pallas_src>

<mosaic_0001>
module attributes {stable_mosaic.version = 11 : i64} {
  func.func @_latent_passthrough_kernel(%arg0: memref<2x8xi32, #tpu.memory_space<vmem>>, %arg1: memref<2x8xi32, #tpu.memory_space<vmem>>) attributes {dimension_semantics = [], scalar_prefetch = 0 : i64, scratch_operands = 0 : i64, tpu.core_type = #tpu.core_type<tc>} {
    %c0 = arith.constant 0 : index
    %c0_0 = arith.constant 0 : index
    %0 = vector.load %arg0[%c0, %c0_0] : memref<2x8xi32, #tpu.memory_space<vmem>>, vector<2x8xi32>
    %c0_1 = arith.constant 0 : index
    %c0_2 = arith.constant 0 : index
    %1 = vector.load %arg1[%c0_1, %c0_2] : memref<2x8xi32, #tpu.memory_space<vmem>>, vector<2x8xi32>
    tpu.vector_store %arg1[%c0_1, %c0_2], %0 {strides = array<i32>} : memref<2x8xi32, #tpu.memory_space<vmem>>, vector<2x8xi32>,
    return
  }
}

</mosaic_0001>

<llo_original>
// kernel: tpu_custom_call.1
$region0: #{tpu_custom_call.1}
  #allocation0 [shape = 'u32[]', space=smem, size = 0x4, offset = 0x4, fixed_abs, tag = 'smem constant byte address 0x4 - core index']
  #allocation1 [shape = 'u32[144,128]{1,0:T(1,128)}', space=vmem, size = 0x12000, scoped, tag = 'internal scratch']
  %s0 = inlined_call_operand.hbm [shape: s32[2,8], index: 0, kind: input, shape index: {}, may-alias: {0,1}]
  %s1 = inlined_call_operand.hbm [shape: s32[2,8], index: 1, kind: output, shape index: {}, may-alias: {0,1}]
  %s2 = sld [smem:[#allocation0]]
  $region18: #{tpu_custom_call.1} parent=0
    _
  %s4 = ssub.s32 1, %s2
  %s5 = scalar_select 0, %s4, %s2
  $region1: #{tpu_custom_call.1} parent=0
    #allocation2 [shape = 'u8[1024]{0}', space=vmem, size = 0x400, scoped, tag = 'input window, operand 0, single buffered']
    #allocation3 [shape = 's32[1]{0}', space=sflag, size = 0x4, scoped, tag = 'scoped memory for tpu_custom_call.1']
    #allocation4 [shape = 's32[1]{0}', space=sflag, size = 0x4, scoped, tag = 'scoped memory for tpu_custom_call.1']
    #allocation5 [shape = 'u8[1024]{0}', space=vmem, size = 0x400, scoped, tag = 'output window, operand 0, single buffered']
    %6 = vsyncpa [#allocation3], 0
    %7 = vsyncpa [#allocation4], 0
    // Predicated region
    $region2: #{tpu_custom_call.1} parent=1 // pred_check
      _
    $region3: #{tpu_custom_call.1} parent=1 // pred_check_branch
      %9 = sbr.rel (0) target = $region5
    $region4: #{tpu_custom_call.1} parent=1 // pred_region
      %s11 = ssub.s32 32, 32
      %12 = vsyncadd [#allocation3], %s11
      %s14 = sshll.u32 [#allocation2], 4
      %s15 = int_to_ptr.vmem [resolvable:$true] %s14
      %17 = dma.hbm_to_vmem [thread:$0]  %s0, 32, %s15, [#allocation3]
    $region5: #{tpu_custom_call.1} parent=1 // pred_fallthru
      _
    // Predicated region
    $region6: #{tpu_custom_call.1} parent=1 // pred_check
      _
    $region7: #{tpu_custom_call.1} parent=1 // pred_check_branch
      %19 = sbr.rel (0) target = $region9
    $region8: #{tpu_custom_call.1} parent=1 // pred_region
      %20 = dma.done [#allocation3], 32
    $region9: #{tpu_custom_call.1} parent=1 // pred_fallthru
      _
    %v21 = vld [vmem:[#allocation2] sm:$0x3]
    %vm22 = vcmask 58368
    %23 = vst.msk [vmem:[#allocation5] sm:$0x3] %vm22, %v21
    // Predicated region
    $region10: #{tpu_custom_call.1} parent=1 // pred_check
      _
    $region11: #{tpu_custom_call.1} parent=1 // pred_check_branch
      %25 = sbr.rel (0) target = $region13
    $region12: #{tpu_custom_call.1} parent=1 // pred_region
      %s27 = ssub.s32 32, 32
      %28 = vsyncadd [#allocation4], %s27
      %s30 = sshll.u32 [#allocation5], 4
      %s31 = int_to_ptr.vmem [resolvable:$true] %s30
      %33 = dma.vmem_to_hbm [thread:$0]  %s31, 32, %s1, [#allocation4]
    $region13: #{tpu_custom_call.1} parent=1 // pred_fallthru
      _
    // Predicated region
    $region14: #{tpu_custom_call.1} parent=1 // pred_check
      _
    $region15: #{tpu_custom_call.1} parent=1 // pred_check_branch
      %35 = sbr.rel (0) target = $region17
    $region16: #{tpu_custom_call.1} parent=1 // pred_region
      %36 = dma.done [#allocation4], 32
    $region17: #{tpu_custom_call.1} parent=1 // pred_fallthru
      _
    %37 = vsyncpa [#allocation3], 1
    %38 = vsyncpa [#allocation4], 1

</llo_original>
